<compile_context>
chip_gen: v7x
topology: tpu7x:2x2x1
jax: 0.10.0
libtpu: 0.0.40
codegen_flags: <defaults>
</compile_context>

<pallas_src>
import functools

import jax
import jax.numpy as jnp
from jax import lax
from jax.experimental import pallas as pl
from jax.experimental.pallas import tpu as pltpu

_EPS = 1e-06 ** 2  # the module's self.e = (1e-6)**2, added inside the sqrt


def _device_defaults():
    """(dma_block_bytes, vmem_limit_bytes, max_tensorcores) per TPU generation."""
    kind = ""
    try:
        kind = jax.devices()[0].device_kind.lower()
    except Exception:  # pragma: no cover - defensive; fall back to safe defaults
        pass
    if "v7" in kind or "7x" in kind:
        # 2 TCs/chip, 64 MiB physical VMEM per TC, ~3.2 TB/s: large blocks amortize
        # the ~0.35us per-step overhead; keep everything under ~48 MiB scoped.
        return 8 * 1024 * 1024, 48 * 1024 * 1024, 2
    if "v6" in kind:
        # 128 MiB VMEM, ~1.4 TB/s: 4 MiB blocks, plenty of scoped headroom.
        return 4 * 1024 * 1024, 64 * 1024 * 1024, 1
    # v5e / unknown: most HBM-bound; default scoped limit is 16 MiB so raise it.
    return 2 * 1024 * 1024, 32 * 1024 * 1024, 1


def _tv_kernel(x_ref, hsum_ref, wsum_ref, *, inner, bc, H, cs, n_chunks, needs_mask):
    c = pl.program_id(0)          # TensorCore split axis (size 1 except on v7x)
    b = pl.program_id(1)          # B*C block axis (sequential reduction)
    r = pl.program_id(2)          # row block axis (sequential reduction)
    tbc, th, W = x_ref.shape

    @pl.when(jnp.logical_and(b == 0, r == 0))
    def _():
        hsum_ref[...] = jnp.zeros_like(hsum_ref)
        wsum_ref[...] = jnp.zeros_like(wsum_ref)

    base = (c * inner + b) * tbc  # first global slice covered by this step
    row0 = r * th                 # first global row covered by this step

    def accumulate(masked):
        def one_chunk(xc, off):
            # xc: (chunk, th, W) in f32 (DMA stays in the stored dtype; cast after load).
            dh = xc[:, 1:, :] - xc[:, :-1, :]          # vertical diffs
            dw = xc[:, :, 1:] - xc[:, :, :-1]          # horizontal diffs
            ch = jnp.sqrt(dh * dh + _EPS)
            cw = jnp.sqrt(dw * dw + _EPS)
            if masked:
                # Only the overhanging step(s) execute this path (pl.when below):
                # zero out-of-range slices and out-of-range rows (their VMEM
                # contents are unspecified; jnp.where is NaN-safe here).
                nvalid = (bc - base) - off
                si = lax.broadcasted_iota(jnp.int32, ch.shape, 0)
                ri = lax.broadcasted_iota(jnp.int32, ch.shape, 1)
                ch = jnp.where(
                    jnp.logical_and(si < nvalid, ri + row0 < H - 1), ch, 0.0)
                si = lax.broadcasted_iota(jnp.int32, cw.shape, 0)
                ri = lax.broadcasted_iota(jnp.int32, cw.shape, 1)
                cw = jnp.where(
                    jnp.logical_and(si < nvalid, ri + row0 < H), cw, 0.0)
            # Reduce only over the slice axis -> plain VPU adds; the cross-lane
            # reduction happens once, in the wrapper.
            return jnp.sum(ch, axis=0), jnp.sum(cw, axis=0)

        if n_chunks == 1:
            hacc, wacc = one_chunk(x_ref[...].astype(jnp.float32), 0)
        else:
            # Chunked inner loop bounds in-kernel temporaries to a few hundred KiB
            # so the DMA block itself can be large.
            def body(s, carry):
                off = pl.multiple_of(s * cs, cs)
                hp, wp = one_chunk(x_ref[pl.ds(off, cs)].astype(jnp.float32), off)
                return carry[0] + hp, carry[1] + wp

            hacc, wacc = lax.fori_loop(
                0, n_chunks, body,
                (jnp.zeros((th - 1, W), jnp.float32),
                 jnp.zeros((th, W - 1), jnp.float32)),
                unroll=n_chunks <= 8)

        hsum_ref[...] += hacc[None]
        wsum_ref[...] += wacc[None]

    if not needs_mask:
        accumulate(masked=False)
    else:
        is_full = jnp.logical_and(base + tbc <= bc, row0 + th <= H)

        @pl.when(is_full)
        def _():
            accumulate(masked=False)

        @pl.when(jnp.logical_not(is_full))
        def _():
            accumulate(masked=True)


def l1_tvloss_charbonnier(x, *, block_slices=None, block_rows=None,
                          chunk_slices=None):
    """Charbonnier TV loss, matching L1_TVLoss_Charbonnier.forward (NCHW input).

    block_slices / block_rows / chunk_slices are test hooks overriding the
    auto-tuned tiling (block_rows must be a multiple of 8 when it tiles H).
    """
    B, C, H, W = x.shape
    assert H >= 2 and W >= 2, "TV loss needs at least 2 pixels per spatial dim"
    bc = B * C
    xf = x.reshape(bc, H, W)                     # contiguous NCHW -> free reshape
    itemsize = x.dtype.itemsize

    block_bytes, vmem_limit, max_cores = _device_defaults()

    # ---- spatial (row) tiling decision ------------------------------------
    plane_f32 = H * W * 4                        # f32 temporaries scale with this
    if block_rows is not None:
        th = int(min(block_rows, H))
    elif plane_f32 > block_bytes // 4:
        # A single (1, H, W) slice is too large: tile rows so the double-buffered
        # input + f32 temporaries + accumulator slabs stay inside the scoped VMEM
        # limit (v7x has only 64 MiB physical per TC).
        row_budget = max(512 * 1024, block_bytes // 4)
        th = max(8, (row_budget // (W * 4)) // 8 * 8)
        th = min(th, H)
    else:
        th = H
    tile_h = th < H
    if tile_h and th % 8 != 0:
        raise ValueError("block_rows must be a multiple of 8 when it tiles H")
    n_h = pl.cdiv(H, th)

    # ---- slice (B*C) tiling + inner chunking -------------------------------
    if tile_h:
        tbc, cs, n_chunks = 1, 1, 1
    else:
        if block_slices is None:
            tbc = max(1, block_bytes // max(1, H * W * itemsize))
        else:
            tbc = max(1, int(block_slices))
        tbc = int(min(tbc, bc))
        if chunk_slices is None:
            cs = max(1, min(tbc, max(1, (512 * 1024 // 4) // (H * W))))
        else:
            cs = max(1, int(min(chunk_slices, tbc)))
        tbc = max(cs, (tbc // cs) * cs)          # make tbc a multiple of the chunk
        n_chunks = tbc // cs

    n_bc_total = pl.cdiv(bc, tbc)
    ncores = min(max_cores, n_bc_total)          # 2 only on v7x (and only if useful)
    inner = pl.cdiv(n_bc_total, ncores)

    slice_ragged = (n_bc_total * tbc != bc) or (ncores * inner != n_bc_total)
    row_ragged = (n_h * th != H)
    needs_mask = slice_ragged or row_ragged

    kernel = functools.partial(
        _tv_kernel, inner=inner, bc=bc, H=H,
        cs=cs, n_chunks=n_chunks, needs_mask=needs_mask)

    if ncores == 1:
        in_index = lambda c, b, r: (b, r, 0)
    else:
        # Odd block counts: the second core's overhanging step re-reads the last
        # real block (clamped index) and its contribution is fully masked in-kernel.
        in_index = lambda c, b, r: (jnp.minimum(c * inner + b, n_bc_total - 1), r, 0)

    core_sem = "parallel"
    if ncores > 1:
        core_sem = getattr(pltpu, "CORE_PARALLEL", "parallel")

    hacc, wacc = pl.pallas_call(
        kernel,
        out_shape=(
            jax.ShapeDtypeStruct((ncores, th - 1, W), jnp.float32),
            jax.ShapeDtypeStruct((ncores, th, W - 1), jnp.float32),
        ),
        grid_spec=pltpu.PrefetchScalarGridSpec(
            num_scalar_prefetch=0,
            grid=(ncores, inner, n_h),
            in_specs=[pl.BlockSpec((tbc, th, W), in_index)],
            out_specs=[
                pl.BlockSpec((1, th - 1, W), lambda c, b, r: (c, 0, 0)),
                pl.BlockSpec((1, th, W - 1), lambda c, b, r: (c, 0, 0)),
            ],
        ),
        compiler_params=pltpu.CompilerParams(
            dimension_semantics=(core_sem, "arbitrary", "arbitrary"),
            vmem_limit_bytes=vmem_limit,
        ),
    )(xf)

    # Vertical pairs straddling a row-block boundary are not covered by any block:
    # finish them with a tiny plain-JAX pass (2*(n_h-1) rows per slice).
    h_total = jnp.sum(hacc)
    if n_h > 1:
        b_rows = jnp.arange(1, n_h, dtype=jnp.int32) * th      # all < H by construction
        lo = xf[:, b_rows - 1, :].astype(jnp.float32)
        hi = xf[:, b_rows, :].astype(jnp.float32)
        d = hi - lo
        h_total = h_total + jnp.sum(jnp.sqrt(d * d + _EPS))

    # Glue math: mean over each difference tensor, then add.
    h_tv = h_total / jnp.float32(bc * (H - 1) * W)
    w_tv = jnp.sum(wacc) / jnp.float32(bc * H * (W - 1))
    return h_tv + w_tv


def _reference(x):
    xf = x.astype(jnp.float32)
    h = xf[:, :, 1:, :] - xf[:, :, :-1, :]
    h = jnp.mean(jnp.sqrt(h * h + _EPS))
    w = xf[:, :, :, 1:] - xf[:, :, :, :-1]
    w = jnp.mean(jnp.sqrt(w * w + _EPS))
    return h + w


if __name__ == "__main__":
    k1, k2 = jax.random.split(jax.random.PRNGKey(0))

    x = jax.random.normal(k1, (2, 4, 16, 16), dtype=jnp.float32)
    ref = _reference(x)

    # Default (auto-sized) path.
    out = jax.block_until_ready(jax.jit(l1_tvloss_charbonnier)(x))
    assert jnp.allclose(out, ref, rtol=1e-5, atol=1e-6), (out, ref)

    # Ragged B*C tail -> pl.when-gated masked path.
    out2 = jax.block_until_ready(
        jax.jit(functools.partial(l1_tvloss_charbonnier, block_slices=3))(x))
    assert jnp.allclose(out2, ref, rtol=1e-5, atol=1e-6), (out2, ref)

    # Inner chunk loop (fori_loop) combined with a ragged tail block.
    out3 = jax.block_until_ready(
        jax.jit(functools.partial(l1_tvloss_charbonnier,
                                  block_slices=6, chunk_slices=2))(x))
    assert jnp.allclose(out3, ref, rtol=1e-5, atol=1e-6), (out3, ref)

    # Spatial (row) tiling: boundary-row pass + ragged last row block.
    x2 = jax.random.normal(k2, (1, 3, 20, 24), dtype=jnp.float32)
    ref2 = _reference(x2)
    out4 = jax.block_until_ready(
        jax.jit(functools.partial(l1_tvloss_charbonnier, block_rows=8))(x2))
    assert jnp.allclose(out4, ref2, rtol=1e-5, atol=1e-6), (out4, ref2)

    print("KERNEL_OK")
</pallas_src>

<mosaic_0001>
module attributes {stable_mosaic.version = 11 : i64} {
  func.func @_tv_kernel(%arg0: i32, %arg1: i32, %arg2: i32, %arg3: memref<8x16x16xf32, #tpu.memory_space<vmem>>, %arg4: memref<1x15x16xf32, #tpu.memory_space<vmem>>, %arg5: memref<1x16x15xf32, #tpu.memory_space<vmem>>) attributes {dimension_semantics = [#tpu.dimension_semantics<parallel>, #tpu.dimension_semantics<arbitrary>, #tpu.dimension_semantics<arbitrary>], iteration_bounds = array<i64: 1, 1, 1>, scalar_prefetch = 0 : i64, scratch_operands = 0 : i64, tpu.core_type = #tpu.core_type<tc>, window_params = [{transform_indices = @transform_0, window_bounds = array<i64: 8, 16, 16>}, {transform_indices = @transform_1, window_bounds = array<i64: 1, 15, 16>}, {transform_indices = @transform_2, window_bounds = array<i64: 1, 16, 15>}]} {
    %c0_i32 = arith.constant 0 : i32
    %0 = arith.cmpi eq, %arg1, %c0_i32 : i32
    %c0_i32_0 = arith.constant 0 : i32
    %1 = arith.cmpi eq, %arg2, %c0_i32_0 : i32
    %2 = arith.andi %0, %1 : i1
    %3 = arith.extui %2 : i1 to i32
    %c0_i32_1 = arith.constant 0 : i32
    %4 = arith.cmpi ne, %3, %c0_i32_1 : i32
    scf.if %4 {
      %cst_19 = arith.constant 0.000000e+00 : f32
      %30 = vector.broadcast %cst_19 : f32 to vector<1x15x16xf32>
      %c0_20 = arith.constant 0 : index
      %c0_21 = arith.constant 0 : index
      %c0_22 = arith.constant 0 : index
      %31 = vector.load %arg4[%c0_20, %c0_21, %c0_22] : memref<1x15x16xf32, #tpu.memory_space<vmem>>, vector<1x15x16xf32>
      tpu.vector_store %arg4[%c0_20, %c0_21, %c0_22], %30 {strides = array<i32>} : memref<1x15x16xf32, #tpu.memory_space<vmem>>, vector<1x15x16xf32>,
      %cst_23 = arith.constant 0.000000e+00 : f32
      %32 = vector.broadcast %cst_23 : f32 to vector<1x16x15xf32>
      %c0_24 = arith.constant 0 : index
      %c0_25 = arith.constant 0 : index
      %c0_26 = arith.constant 0 : index
      %33 = vector.load %arg5[%c0_24, %c0_25, %c0_26] : memref<1x16x15xf32, #tpu.memory_space<vmem>>, vector<1x16x15xf32>
      tpu.vector_store %arg5[%c0_24, %c0_25, %c0_26], %32 {strides = array<i32>} : memref<1x16x15xf32, #tpu.memory_space<vmem>>, vector<1x16x15xf32>,
    } else {
    }
    %c0 = arith.constant 0 : index
    %c0_2 = arith.constant 0 : index
    %c0_3 = arith.constant 0 : index
    %5 = vector.load %arg3[%c0, %c0_2, %c0_3] : memref<8x16x16xf32, #tpu.memory_space<vmem>>, vector<8x16x16xf32>
    %6 = vector.extract_strided_slice %5 {offsets = [0, 1, 0], sizes = [8, 15, 16], strides = [1, 1, 1]} : vector<8x16x16xf32> to vector<8x15x16xf32>
    %7 = vector.extract_strided_slice %5 {offsets = [0, 0, 0], sizes = [8, 15, 16], strides = [1, 1, 1]} : vector<8x16x16xf32> to vector<8x15x16xf32>
    %8 = arith.subf %6, %7 : vector<8x15x16xf32>
    %9 = vector.extract_strided_slice %5 {offsets = [0, 0, 1], sizes = [8, 16, 15], strides = [1, 1, 1]} : vector<8x16x16xf32> to vector<8x16x15xf32>
    %10 = vector.extract_strided_slice %5 {offsets = [0, 0, 0], sizes = [8, 16, 15], strides = [1, 1, 1]} : vector<8x16x16xf32> to vector<8x16x15xf32>
    %11 = arith.subf %9, %10 : vector<8x16x15xf32>
    %12 = arith.mulf %8, %8 : vector<8x15x16xf32>
    %cst = arith.constant 9.99999996E-13 : f32
    %13 = vector.broadcast %cst : f32 to vector<8x15x16xf32>
    %14 = arith.addf %12, %13 : vector<8x15x16xf32>
    %15 = math.sqrt %14 : vector<8x15x16xf32>
    %16 = arith.mulf %11, %11 : vector<8x16x15xf32>
    %cst_4 = arith.constant 9.99999996E-13 : f32
    %17 = vector.broadcast %cst_4 : f32 to vector<8x16x15xf32>
    %18 = arith.addf %16, %17 : vector<8x16x15xf32>
    %19 = math.sqrt %18 : vector<8x16x15xf32>
    %cst_5 = arith.constant dense<0.000000e+00> : vector<15x16xf32>
    %20 = vector.multi_reduction <add>, %15, %cst_5 [0] : vector<8x15x16xf32> to vector<15x16xf32>
    %cst_6 = arith.constant dense<0.000000e+00> : vector<16x15xf32>
    %21 = vector.multi_reduction <add>, %19, %cst_6 [0] : vector<8x16x15xf32> to vector<16x15xf32>
    %c0_7 = arith.constant 0 : index
    %c0_8 = arith.constant 0 : index
    %c0_9 = arith.constant 0 : index
    %22 = vector.load %arg4[%c0_7, %c0_8, %c0_9] : memref<1x15x16xf32, #tpu.memory_space<vmem>>, vector<1x15x16xf32>
    %23 = vector.shape_cast %20 : vector<15x16xf32> to vector<1x15x16xf32>
    %24 = arith.addf %22, %23 : vector<1x15x16xf32>
    %c0_10 = arith.constant 0 : index
    %c0_11 = arith.constant 0 : index
    %c0_12 = arith.constant 0 : index
    %25 = vector.load %arg4[%c0_10, %c0_11, %c0_12] : memref<1x15x16xf32, #tpu.memory_space<vmem>>, vector<1x15x16xf32>
    tpu.vector_store %arg4[%c0_10, %c0_11, %c0_12], %24 {strides = array<i32>} : memref<1x15x16xf32, #tpu.memory_space<vmem>>, vector<1x15x16xf32>,
    %c0_13 = arith.constant 0 : index
    %c0_14 = arith.constant 0 : index
    %c0_15 = arith.constant 0 : index
    %26 = vector.load %arg5[%c0_13, %c0_14, %c0_15] : memref<1x16x15xf32, #tpu.memory_space<vmem>>, vector<1x16x15xf32>
    %27 = vector.shape_cast %21 : vector<16x15xf32> to vector<1x16x15xf32>
    %28 = arith.addf %26, %27 : vector<1x16x15xf32>
    %c0_16 = arith.constant 0 : index
    %c0_17 = arith.constant 0 : index
    %c0_18 = arith.constant 0 : index
    %29 = vector.load %arg5[%c0_16, %c0_17, %c0_18] : memref<1x16x15xf32, #tpu.memory_space<vmem>>, vector<1x16x15xf32>
    tpu.vector_store %arg5[%c0_16, %c0_17, %c0_18], %28 {strides = array<i32>} : memref<1x16x15xf32, #tpu.memory_space<vmem>>, vector<1x16x15xf32>,
    return
  }
  func.func @transform_0(%arg0: i32, %arg1: i32, %arg2: i32) -> (i32, i32, i32) {
    %c0_i32 = arith.constant 0 : i32
    %c0_i32_0 = arith.constant 0 : i32
    return %arg1, %arg2, %c0_i32 : i32, i32, i32
  }
  func.func @transform_1(%arg0: i32, %arg1: i32, %arg2: i32) -> (i32, i32, i32) {
    %c0_i32 = arith.constant 0 : i32
    %c0_i32_0 = arith.constant 0 : i32
    %c0_i32_1 = arith.constant 0 : i32
    return %arg0, %c0_i32, %c0_i32_0 : i32, i32, i32
  }
  func.func @transform_2(%arg0: i32, %arg1: i32, %arg2: i32) -> (i32, i32, i32) {
    %c0_i32 = arith.constant 0 : i32
    %c0_i32_0 = arith.constant 0 : i32
    %c0_i32_1 = arith.constant 0 : i32
    return %arg0, %c0_i32, %c0_i32_0 : i32, i32, i32
  }
}

</mosaic_0001>

<llo_original>
// kernel: l1_tvloss_charbonnier.1
$region0: #{l1_tvloss_charbonnier.1}
  #allocation0 [shape = 'u32[]', space=smem, size = 0x4, offset = 0x4, fixed_abs, tag = 'smem constant byte address 0x4 - core index']
  #allocation1 [shape = 'u32[144,128]{1,0:T(1,128)}', space=vmem, size = 0x12000, scoped, tag = 'internal scratch']
  %s0 = inlined_call_operand.hbm [shape: f32[8,16,16], index: 0, kind: input, shape index: {}]
  %s1 = inlined_call_operand.vmem [shape: f32[1,15,16], index: 1, kind: output, shape index: {0}]
  %s2 = inlined_call_operand.vmem [shape: f32[1,16,15], index: 2, kind: output, shape index: {1}]
  %3 = xla_tuple %s1, %s2
  %s4 = sld [smem:[#allocation0]]
  $region30: #{l1_tvloss_charbonnier.1} parent=0
    _
  %s6 = ssub.s32 1, %s4
  %s7 = scalar_select 0, %s6, %s4
  $region1: #{l1_tvloss_charbonnier.1} parent=0
    #allocation2 [shape = 'u8[65536]{0}', space=vmem, size = 0x10000, scoped, tag = 'input window, operand 0, single buffered']
    #allocation3 [shape = 's32[1]{0}', space=sflag, size = 0x4, scoped, tag = 'scoped memory for l1_tvloss_charbonnier.1']
    %8 = vsyncpa [#allocation3], 0
    // Predicated region
    $region2: #{l1_tvloss_charbonnier.1} parent=1 // pred_check
      _
    $region3: #{l1_tvloss_charbonnier.1} parent=1 // pred_check_branch
      %10 = sbr.rel (0) target = $region5
    $region4: #{l1_tvloss_charbonnier.1} parent=1 // pred_region
      %s12 = ssub.s32 2048, 2048
      %13 = vsyncadd [#allocation3], %s12
      %s14 = sshll.u32 [#allocation2], 4
      %s15 = int_to_ptr.vmem [resolvable:$true] %s14
      %20 = dma.hbm_to_vmem [thread:$0]  %s0, 2048, %s15, [#allocation3], 128, 128, 8
    $region5: #{l1_tvloss_charbonnier.1} parent=1 // pred_fallthru
      _
    // Predicated region
    $region6: #{l1_tvloss_charbonnier.1} parent=1 // pred_check
      _
    $region7: #{l1_tvloss_charbonnier.1} parent=1 // pred_check_branch
      %22 = sbr.rel (0) target = $region9
    $region8: #{l1_tvloss_charbonnier.1} parent=1 // pred_region
      %23 = dma.done [#allocation3], 2048
    $region9: #{l1_tvloss_charbonnier.1} parent=1 // pred_fallthru
      _
    %p24 = scmp.eq.s32.totalorder 0, 0
    %p25 = scmp.eq.s32.totalorder 0, 0
    %p26 = pnand %p24, %p25
    %p27 = pneg %p26
    // Predicated region
    $region10: #{l1_tvloss_charbonnier.1} parent=1 // pred_check
      _
    $region11: #{l1_tvloss_charbonnier.1} parent=1 // pred_check_branch
      %29 = sbr.rel (%p26) target = $region13
    $region12: #{l1_tvloss_charbonnier.1} parent=1 // pred_region
      %vm30 = vcmask 130048
      %31 = vst.msk [vmem:[%s1] sm:$0xff] %vm30, 0.0
      %vm32 = vcmask 129024
      %33 = vst.msk [vmem:[%s1 + $0x8] sm:$0x7f] %vm32, 0.0
      %vm34 = vcmask 121856
      %35 = vst.msk [vmem:[%s2] sm:$0xff] %vm34, 0.0
      %36 = vst.msk [vmem:[%s2 + $0x8] sm:$0xff] %vm34, 0.0
    $region13: #{l1_tvloss_charbonnier.1} parent=1 // pred_fallthru
      _
    %v37 = vld [vmem:[#allocation2] sm:$0xff]
    %v38 = vld [vmem:[#allocation2 + $0x8] sm:$0xff]
    %v39 = vld [vmem:[#allocation2 + $0x10] sm:$0xff]
    %v40 = vld [vmem:[#allocation2 + $0x18] sm:$0xff]
    %v41 = vld [vmem:[#allocation2 + $0x20] sm:$0xff]
    %v42 = vld [vmem:[#allocation2 + $0x28] sm:$0xff]
    %v43 = vld [vmem:[#allocation2 + $0x30] sm:$0xff]
    %v44 = vld [vmem:[#allocation2 + $0x38] sm:$0xff]
    %v45 = vld [vmem:[#allocation2 + $0x40] sm:$0xff]
    %v46 = vld [vmem:[#allocation2 + $0x48] sm:$0xff]
    %v47 = vld [vmem:[#allocation2 + $0x50] sm:$0xff]
    %v48 = vld [vmem:[#allocation2 + $0x58] sm:$0xff]
    %v49 = vld [vmem:[#allocation2 + $0x60] sm:$0xff]
    %v50 = vld [vmem:[#allocation2 + $0x68] sm:$0xff]
    %v51 = vld [vmem:[#allocation2 + $0x70] sm:$0xff]
    %v52 = vld [vmem:[#allocation2 + $0x78] sm:$0xff]
    %vm69 = vcmask 1040384
    %v70 = vrot.slane %v37, 7
    %v71 = vrot.slane %v38, 7
    %v72 = vsel %vm69, %v70, %v71
    %v73 = vrot.slane %v39, 7
    %v74 = vrot.slane %v40, 7
    %v75 = vsel %vm69, %v73, %v74
    %v76 = vrot.slane %v41, 7
    %v77 = vrot.slane %v42, 7
    %v78 = vsel %vm69, %v76, %v77
    %v79 = vrot.slane %v43, 7
    %v80 = vrot.slane %v44, 7
    %v81 = vsel %vm69, %v79, %v80
    %v82 = vrot.slane %v45, 7
    %v83 = vrot.slane %v46, 7
    %v84 = vsel %vm69, %v82, %v83
    %v85 = vrot.slane %v47, 7
    %v86 = vrot.slane %v48, 7
    %v87 = vsel %vm69, %v85, %v86
    %v88 = vrot.slane %v49, 7
    %v89 = vrot.slane %v50, 7
    %v90 = vsel %vm69, %v88, %v89
    %v91 = vrot.slane %v51, 7
    %v92 = vrot.slane %v52, 7
    %v93 = vsel %vm69, %v91, %v92
    %v110 = vsub.f32 %v37, %v70
    %v111 = vsub.f32 %v38, %v72
    %v112 = vsub.f32 %v39, %v73
    %v113 = vsub.f32 %v40, %v75
    %v114 = vsub.f32 %v41, %v76
    %v115 = vsub.f32 %v42, %v78
    %v116 = vsub.f32 %v43, %v79
    %v117 = vsub.f32 %v44, %v81
    %v118 = vsub.f32 %v45, %v82
    %v119 = vsub.f32 %v46, %v84
    %v120 = vsub.f32 %v47, %v85
    %v121 = vsub.f32 %v48, %v87
    %v122 = vsub.f32 %v49, %v88
    %v123 = vsub.f32 %v50, %v90
    %v124 = vsub.f32 %v51, %v91
    %v125 = vsub.f32 %v52, %v93
    %126 = vrot.lane.b32.xlu0 %v37, 1
    %v127 = vpop.permute.xlu0 %126
    %128 = vrot.lane.b32.xlu0 %v38, 1
    %v129 = vpop.permute.xlu0 %128
    %130 = vrot.lane.b32.xlu0 %v39, 1
    %v131 = vpop.permute.xlu0 %130
    %132 = vrot.lane.b32.xlu0 %v40, 1
    %v133 = vpop.permute.xlu0 %132
    %134 = vrot.lane.b32.xlu0 %v41, 1
    %v135 = vpop.permute.xlu0 %134
    %136 = vrot.lane.b32.xlu0 %v42, 1
    %v137 = vpop.permute.xlu0 %136
    %138 = vrot.lane.b32.xlu0 %v43, 1
    %v139 = vpop.permute.xlu0 %138
    %140 = vrot.lane.b32.xlu0 %v44, 1
    %v141 = vpop.permute.xlu0 %140
    %142 = vrot.lane.b32.xlu0 %v45, 1
    %v143 = vpop.permute.xlu0 %142
    %144 = vrot.lane.b32.xlu0 %v46, 1
    %v145 = vpop.permute.xlu0 %144
    %146 = vrot.lane.b32.xlu0 %v47, 1
    %v147 = vpop.permute.xlu0 %146
    %148 = vrot.lane.b32.xlu0 %v48, 1
    %v149 = vpop.permute.xlu0 %148
    %150 = vrot.lane.b32.xlu0 %v49, 1
    %v151 = vpop.permute.xlu0 %150
    %152 = vrot.lane.b32.xlu0 %v50, 1
    %v153 = vpop.permute.xlu0 %152
    %154 = vrot.lane.b32.xlu0 %v51, 1
    %v155 = vpop.permute.xlu0 %154
    %156 = vrot.lane.b32.xlu0 %v52, 1
    %v157 = vpop.permute.xlu0 %156
    %v174 = vsub.f32 %v37, %v127
    %v175 = vsub.f32 %v38, %v129
    %v176 = vsub.f32 %v39, %v131
    %v177 = vsub.f32 %v40, %v133
    %v178 = vsub.f32 %v41, %v135
    %v179 = vsub.f32 %v42, %v137
    %v180 = vsub.f32 %v43, %v139
    %v181 = vsub.f32 %v44, %v141
    %v182 = vsub.f32 %v45, %v143
    %v183 = vsub.f32 %v46, %v145
    %v184 = vsub.f32 %v47, %v147
    %v185 = vsub.f32 %v48, %v149
    %v186 = vsub.f32 %v49, %v151
    %v187 = vsub.f32 %v50, %v153
    %v188 = vsub.f32 %v51, %v155
    %v189 = vsub.f32 %v52, %v157
    %v190 = vmul.f32 %v110, %v110
    %v191 = vmul.f32 %v111, %v111
    %v192 = vmul.f32 %v112, %v112
    %v193 = vmul.f32 %v113, %v113
    %v194 = vmul.f32 %v114, %v114
    %v195 = vmul.f32 %v115, %v115
    %v196 = vmul.f32 %v116, %v116
    %v197 = vmul.f32 %v117, %v117
    %v198 = vmul.f32 %v118, %v118
    %v199 = vmul.f32 %v119, %v119
    %v200 = vmul.f32 %v120, %v120
    %v201 = vmul.f32 %v121, %v121
    %v202 = vmul.f32 %v122, %v122
    %v203 = vmul.f32 %v123, %v123
    %v204 = vmul.f32 %v124, %v124
    %v205 = vmul.f32 %v125, %v125
    %v206 = vadd.f32 %v190, 1e-12
    %v207 = vadd.f32 %v191, 1e-12
    %v208 = vadd.f32 %v192, 1e-12
    %v209 = vadd.f32 %v193, 1e-12
    %v210 = vadd.f32 %v194, 1e-12
    %v211 = vadd.f32 %v195, 1e-12
    %v212 = vadd.f32 %v196, 1e-12
    %v213 = vadd.f32 %v197, 1e-12
    %v214 = vadd.f32 %v198, 1e-12
    %v215 = vadd.f32 %v199, 1e-12
    %v216 = vadd.f32 %v200, 1e-12
    %v217 = vadd.f32 %v201, 1e-12
    %v218 = vadd.f32 %v202, 1e-12
    %v219 = vadd.f32 %v203, 1e-12
    %v220 = vadd.f32 %v204, 1e-12
    %v221 = vadd.f32 %v205, 1e-12
    %v222 = vrsqrt.pop %v206
    %v223 = vmul.f32 %v206, %v222
    %vm224 = vcmp.eq.f32.partialorder %v206, inf
    %v225 = vsel %vm224, %v206, %v223
    %vm226 = vcmp.eq.f32.partialorder %v206, 0.0
    %v227 = vand.u32 %v206, 2147483648
    %v228 = vsel %vm226, %v227, %v225
    %v229 = vrsqrt.pop %v207
    %v230 = vmul.f32 %v207, %v229
    %vm231 = vcmp.eq.f32.partialorder %v207, inf
    %v232 = vsel %vm231, %v207, %v230
    %vm233 = vcmp.eq.f32.partialorder %v207, 0.0
    %v234 = vand.u32 %v207, 2147483648
    %v235 = vsel %vm233, %v234, %v232
    %v236 = vrsqrt.pop %v208
    %v237 = vmul.f32 %v208, %v236
    %vm238 = vcmp.eq.f32.partialorder %v208, inf
    %v239 = vsel %vm238, %v208, %v237
    %vm240 = vcmp.eq.f32.partialorder %v208, 0.0
    %v241 = vand.u32 %v208, 2147483648
    %v242 = vsel %vm240, %v241, %v239
    %v243 = vrsqrt.pop %v209
    %v244 = vmul.f32 %v209, %v243
    %vm245 = vcmp.eq.f32.partialorder %v209, inf
    %v246 = vsel %vm245, %v209, %v244
    %vm247 = vcmp.eq.f32.partialorder %v209, 0.0
    %v248 = vand.u32 %v209, 2147483648
    %v249 = vsel %vm247, %v248, %v246
    %v250 = vrsqrt.pop %v210
    %v251 = vmul.f32 %v210, %v250
    %vm252 = vcmp.eq.f32.partialorder %v210, inf
    %v253 = vsel %vm252, %v210, %v251
    %vm254 = vcmp.eq.f32.partialorder %v210, 0.0
    %v255 = vand.u32 %v210, 2147483648
    %v256 = vsel %vm254, %v255, %v253
    %v257 = vrsqrt.pop %v211
    %v258 = vmul.f32 %v211, %v257
    %vm259 = vcmp.eq.f32.partialorder %v211, inf
    %v260 = vsel %vm259, %v211, %v258
    %vm261 = vcmp.eq.f32.partialorder %v211, 0.0
    %v262 = vand.u32 %v211, 2147483648
    %v263 = vsel %vm261, %v262, %v260
    %v264 = vrsqrt.pop %v212
    %v265 = vmul.f32 %v212, %v264
    %vm266 = vcmp.eq.f32.partialorder %v212, inf
    %v267 = vsel %vm266, %v212, %v265
    %vm268 = vcmp.eq.f32.partialorder %v212, 0.0
    %v269 = vand.u32 %v212, 2147483648
    %v270 = vsel %vm268, %v269, %v267
    %v271 = vrsqrt.pop %v213
    %v272 = vmul.f32 %v213, %v271
    %vm273 = vcmp.eq.f32.partialorder %v213, inf
    %v274 = vsel %vm273, %v213, %v272
    %vm275 = vcmp.eq.f32.partialorder %v213, 0.0
    %v276 = vand.u32 %v213, 2147483648
    %v277 = vsel %vm275, %v276, %v274
    %v278 = vrsqrt.pop %v214
    %v279 = vmul.f32 %v214, %v278
    %vm280 = vcmp.eq.f32.partialorder %v214, inf
    %v281 = vsel %vm280, %v214, %v279
    %vm282 = vcmp.eq.f32.partialorder %v214, 0.0
    %v283 = vand.u32 %v214, 2147483648
    %v284 = vsel %vm282, %v283, %v281
    %v285 = vrsqrt.pop %v215
    %v286 = vmul.f32 %v215, %v285
    %vm287 = vcmp.eq.f32.partialorder %v215, inf
    %v288 = vsel %vm287, %v215, %v286
    %vm289 = vcmp.eq.f32.partialorder %v215, 0.0
    %v290 = vand.u32 %v215, 2147483648
    %v291 = vsel %vm289, %v290, %v288
    %v292 = vrsqrt.pop %v216
    %v293 = vmul.f32 %v216, %v292
    %vm294 = vcmp.eq.f32.partialorder %v216, inf
    %v295 = vsel %vm294, %v216, %v293
    %vm296 = vcmp.eq.f32.partialorder %v216, 0.0
    %v297 = vand.u32 %v216, 2147483648
    %v298 = vsel %vm296, %v297, %v295
    %v299 = vrsqrt.pop %v217
    %v300 = vmul.f32 %v217, %v299
    %vm301 = vcmp.eq.f32.partialorder %v217, inf
    %v302 = vsel %vm301, %v217, %v300
    %vm303 = vcmp.eq.f32.partialorder %v217, 0.0
    %v304 = vand.u32 %v217, 2147483648
    %v305 = vsel %vm303, %v304, %v302
    %v306 = vrsqrt.pop %v218
    %v307 = vmul.f32 %v218, %v306
    %vm308 = vcmp.eq.f32.partialorder %v218, inf
    %v309 = vsel %vm308, %v218, %v307
    %vm310 = vcmp.eq.f32.partialorder %v218, 0.0
    %v311 = vand.u32 %v218, 2147483648
    %v312 = vsel %vm310, %v311, %v309
    %v313 = vrsqrt.pop %v219
    %v314 = vmul.f32 %v219, %v313
    %vm315 = vcmp.eq.f32.partialorder %v219, inf
    %v316 = vsel %vm315, %v219, %v314
    %vm317 = vcmp.eq.f32.partialorder %v219, 0.0
    %v318 = vand.u32 %v219, 2147483648
    %v319 = vsel %vm317, %v318, %v316
    %v320 = vrsqrt.pop %v220
    %v321 = vmul.f32 %v220, %v320
    %vm322 = vcmp.eq.f32.partialorder %v220, inf
    %v323 = vsel %vm322, %v220, %v321
    %vm324 = vcmp.eq.f32.partialorder %v220, 0.0
    %v325 = vand.u32 %v220, 2147483648
    %v326 = vsel %vm324, %v325, %v323
    %v327 = vrsqrt.pop %v221
    %v328 = vmul.f32 %v221, %v327
    %vm329 = vcmp.eq.f32.partialorder %v221, inf
    %v330 = vsel %vm329, %v221, %v328
    %vm331 = vcmp.eq.f32.partialorder %v221, 0.0
    %v332 = vand.u32 %v221, 2147483648
    %v333 = vsel %vm331, %v332, %v330
    %v334 = vmul.f32 %v174, %v174
    %v335 = vmul.f32 %v175, %v175
    %v336 = vmul.f32 %v176, %v176
    %v337 = vmul.f32 %v177, %v177
    %v338 = vmul.f32 %v178, %v178
    %v339 = vmul.f32 %v179, %v179
    %v340 = vmul.f32 %v180, %v180
    %v341 = vmul.f32 %v181, %v181
    %v342 = vmul.f32 %v182, %v182
    %v343 = vmul.f32 %v183, %v183
    %v344 = vmul.f32 %v184, %v184
    %v345 = vmul.f32 %v185, %v185
    %v346 = vmul.f32 %v186, %v186
    %v347 = vmul.f32 %v187, %v187
    %v348 = vmul.f32 %v188, %v188
    %v349 = vmul.f32 %v189, %v189
    %v350 = vadd.f32 %v334, 1e-12
    %v351 = vadd.f32 %v335, 1e-12
    %v352 = vadd.f32 %v336, 1e-12
    %v353 = vadd.f32 %v337, 1e-12
    %v354 = vadd.f32 %v338, 1e-12
    %v355 = vadd.f32 %v339, 1e-12
    %v356 = vadd.f32 %v340, 1e-12
    %v357 = vadd.f32 %v341, 1e-12
    %v358 = vadd.f32 %v342, 1e-12
    %v359 = vadd.f32 %v343, 1e-12
    %v360 = vadd.f32 %v344, 1e-12
    %v361 = vadd.f32 %v345, 1e-12
    %v362 = vadd.f32 %v346, 1e-12
    %v363 = vadd.f32 %v347, 1e-12
    %v364 = vadd.f32 %v348, 1e-12
    %v365 = vadd.f32 %v349, 1e-12
    %v366 = vrsqrt.pop %v350
    %v367 = vmul.f32 %v350, %v366
    %vm368 = vcmp.eq.f32.partialorder %v350, inf
    %v369 = vsel %vm368, %v350, %v367
    %vm370 = vcmp.eq.f32.partialorder %v350, 0.0
    %v371 = vand.u32 %v350, 2147483648
    %v372 = vsel %vm370, %v371, %v369
    %v373 = vrsqrt.pop %v351
    %v374 = vmul.f32 %v351, %v373
    %vm375 = vcmp.eq.f32.partialorder %v351, inf
    %v376 = vsel %vm375, %v351, %v374
    %vm377 = vcmp.eq.f32.partialorder %v351, 0.0
    %v378 = vand.u32 %v351, 2147483648
    %v379 = vsel %vm377, %v378, %v376
    %v380 = vrsqrt.pop %v352
    %v381 = vmul.f32 %v352, %v380
    %vm382 = vcmp.eq.f32.partialorder %v352, inf
    %v383 = vsel %vm382, %v352, %v381
    %vm384 = vcmp.eq.f32.partialorder %v352, 0.0
    %v385 = vand.u32 %v352, 2147483648
    %v386 = vsel %vm384, %v385, %v383
    %v387 = vrsqrt.pop %v353
    %v388 = vmul.f32 %v353, %v387
    %vm389 = vcmp.eq.f32.partialorder %v353, inf
    %v390 = vsel %vm389, %v353, %v388
    %vm391 = vcmp.eq.f32.partialorder %v353, 0.0
    %v392 = vand.u32 %v353, 2147483648
    %v393 = vsel %vm391, %v392, %v390
    %v394 = vrsqrt.pop %v354
    %v395 = vmul.f32 %v354, %v394
    %vm396 = vcmp.eq.f32.partialorder %v354, inf
    %v397 = vsel %vm396, %v354, %v395
    %vm398 = vcmp.eq.f32.partialorder %v354, 0.0
    %v399 = vand.u32 %v354, 2147483648
    %v400 = vsel %vm398, %v399, %v397
    %v401 = vrsqrt.pop %v355
    %v402 = vmul.f32 %v355, %v401
    %vm403 = vcmp.eq.f32.partialorder %v355, inf
    %v404 = vsel %vm403, %v355, %v402
    %vm405 = vcmp.eq.f32.partialorder %v355, 0.0
    %v406 = vand.u32 %v355, 2147483648
    %v407 = vsel %vm405, %v406, %v404
    %v408 = vrsqrt.pop %v356
    %v409 = vmul.f32 %v356, %v408
    %vm410 = vcmp.eq.f32.partialorder %v356, inf
    %v411 = vsel %vm410, %v356, %v409
    %vm412 = vcmp.eq.f32.partialorder %v356, 0.0
    %v413 = vand.u32 %v356, 2147483648
    %v414 = vsel %vm412, %v413, %v411
    %v415 = vrsqrt.pop %v357
    %v416 = vmul.f32 %v357, %v415
    %vm417 = vcmp.eq.f32.partialorder %v357, inf
    %v418 = vsel %vm417, %v357, %v416
    %vm419 = vcmp.eq.f32.partialorder %v357, 0.0
    %v420 = vand.u32 %v357, 2147483648
    %v421 = vsel %vm419, %v420, %v418
    %v422 = vrsqrt.pop %v358
    %v423 = vmul.f32 %v358, %v422
    %vm424 = vcmp.eq.f32.partialorder %v358, inf
    %v425 = vsel %vm424, %v358, %v423
    %vm426 = vcmp.eq.f32.partialorder %v358, 0.0
    %v427 = vand.u32 %v358, 2147483648
    %v428 = vsel %vm426, %v427, %v425
    %v429 = vrsqrt.pop %v359
    %v430 = vmul.f32 %v359, %v429
    %vm431 = vcmp.eq.f32.partialorder %v359, inf
    %v432 = vsel %vm431, %v359, %v430
    %vm433 = vcmp.eq.f32.partialorder %v359, 0.0
    %v434 = vand.u32 %v359, 2147483648
    %v435 = vsel %vm433, %v434, %v432
    %v436 = vrsqrt.pop %v360
    %v437 = vmul.f32 %v360, %v436
    %vm438 = vcmp.eq.f32.partialorder %v360, inf
    %v439 = vsel %vm438, %v360, %v437
    %vm440 = vcmp.eq.f32.partialorder %v360, 0.0
    %v441 = vand.u32 %v360, 2147483648
    %v442 = vsel %vm440, %v441, %v439
    %v443 = vrsqrt.pop %v361
    %v444 = vmul.f32 %v361, %v443
    %vm445 = vcmp.eq.f32.partialorder %v361, inf
    %v446 = vsel %vm445, %v361, %v444
    %vm447 = vcmp.eq.f32.partialorder %v361, 0.0
    %v448 = vand.u32 %v361, 2147483648
    %v449 = vsel %vm447, %v448, %v446
    %v450 = vrsqrt.pop %v362
    %v451 = vmul.f32 %v362, %v450
    %vm452 = vcmp.eq.f32.partialorder %v362, inf
    %v453 = vsel %vm452, %v362, %v451
    %vm454 = vcmp.eq.f32.partialorder %v362, 0.0
    %v455 = vand.u32 %v362, 2147483648
    %v456 = vsel %vm454, %v455, %v453
    %v457 = vrsqrt.pop %v363
    %v458 = vmul.f32 %v363, %v457
    %vm459 = vcmp.eq.f32.partialorder %v363, inf
    %v460 = vsel %vm459, %v363, %v458
    %vm461 = vcmp.eq.f32.partialorder %v363, 0.0
    %v462 = vand.u32 %v363, 2147483648
    %v463 = vsel %vm461, %v462, %v460
    %v464 = vrsqrt.pop %v364
    %v465 = vmul.f32 %v364, %v464
    %vm466 = vcmp.eq.f32.partialorder %v364, inf
    %v467 = vsel %vm466, %v364, %v465
    %vm468 = vcmp.eq.f32.partialorder %v364, 0.0
    %v469 = vand.u32 %v364, 2147483648
    %v470 = vsel %vm468, %v469, %v467
    %v471 = vrsqrt.pop %v365
    %v472 = vmul.f32 %v365, %v471
    %vm473 = vcmp.eq.f32.partialorder %v365, inf
    %v474 = vsel %vm473, %v365, %v472
    %vm475 = vcmp.eq.f32.partialorder %v365, 0.0
    %v476 = vand.u32 %v365, 2147483648
    %v477 = vsel %vm475, %v476, %v474
    %vm478 = vcmask 130049
    %v479 = vsel %vm478, %v228, 0.0
    %v480 = vsel %vm478, %v242, 0.0
    %v481 = vadd.f32 %v479, %v480
    %v482 = vsel %vm478, %v256, 0.0
    %v483 = vadd.f32 %v481, %v482
    %v484 = vsel %vm478, %v270, 0.0
    %v485 = vadd.f32 %v483, %v484
    %v486 = vsel %vm478, %v284, 0.0
    %v487 = vadd.f32 %v485, %v486
    %v488 = vsel %vm478, %v298, 0.0
    %v489 = vadd.f32 %v487, %v488
    %v490 = vsel %vm478, %v312, 0.0
    %v491 = vadd.f32 %v489, %v490
    %v492 = vsel %vm478, %v326, 0.0
    %v493 = vadd.f32 %v491, %v492
    %vm494 = vcmask 130048
    %v495 = vsel %vm494, %v235, 0.0
    %v496 = vsel %vm494, %v249, 0.0
    %v497 = vadd.f32 %v495, %v496
    %v498 = vsel %vm494, %v263, 0.0
    %v499 = vadd.f32 %v497, %v498
    %v500 = vsel %vm494, %v277, 0.0
    %v501 = vadd.f32 %v499, %v500
    %v502 = vsel %vm494, %v291, 0.0
    %v503 = vadd.f32 %v501, %v502
    %v504 = vsel %vm494, %v305, 0.0
    %v505 = vadd.f32 %v503, %v504
    %v506 = vsel %vm494, %v319, 0.0
    %v507 = vadd.f32 %v505, %v506
    %v508 = vsel %vm494, %v333, 0.0
    %v509 = vadd.f32 %v507, %v508
    %vm510 = vcmask 130056
    %v511 = vsel %vm510, %v372, 0.0
    %v512 = vsel %vm510, %v386, 0.0
    %v513 = vadd.f32 %v511, %v512
    %v514 = vsel %vm510, %v400, 0.0
    %v515 = vadd.f32 %v513, %v514
    %v516 = vsel %vm510, %v414, 0.0
    %v517 = vadd.f32 %v515, %v516
    %v518 = vsel %vm510, %v428, 0.0
    %v519 = vadd.f32 %v517, %v518
    %v520 = vsel %vm510, %v442, 0.0
    %v521 = vadd.f32 %v519, %v520
    %v522 = vsel %vm510, %v456, 0.0
    %v523 = vadd.f32 %v521, %v522
    %v524 = vsel %vm510, %v470, 0.0
    %v525 = vadd.f32 %v523, %v524
    %v526 = vsel %vm510, %v379, 0.0
    %v527 = vsel %vm510, %v393, 0.0
    %v528 = vadd.f32 %v526, %v527
    %v529 = vsel %vm510, %v407, 0.0
    %v530 = vadd.f32 %v528, %v529
    %v531 = vsel %vm510, %v421, 0.0
    %v532 = vadd.f32 %v530, %v531
    %v533 = vsel %vm510, %v435, 0.0
    %v534 = vadd.f32 %v532, %v533
    %v535 = vsel %vm510, %v449, 0.0
    %v536 = vadd.f32 %v534, %v535
    %v537 = vsel %vm510, %v463, 0.0
    %v538 = vadd.f32 %v536, %v537
    %v539 = vsel %vm510, %v477, 0.0
    %v540 = vadd.f32 %v538, %v539
    %v541 = vld [vmem:[%s1] sm:$0xff]
    %v542 = vld [vmem:[%s1 + $0x8] sm:$0x7f]
    %vm545 = vcmask 1046528
    %v546 = vrot.slane %v493, 1
    %v547 = vrot.slane %v509, 1
    %v548 = vsel %vm545, %v546, %v547
    %v551 = vadd.f32 %v541, %v548
    %v552 = vadd.f32 %v542, %v547
    %553 = vst.msk [vmem:[%s1] sm:$0xff] %vm494, %v551
    %vm554 = vcmask 129024
    %555 = vst.msk [vmem:[%s1 + $0x8] sm:$0x7f] %vm554, %v552
    %v556 = vld [vmem:[%s2] sm:$0xff]
    %v557 = vld [vmem:[%s2 + $0x8] sm:$0xff]
    %560 = vrot.lane.b32.xlu0 %v525, 127
    %v561 = vpop.permute.xlu0 %560
    %562 = vrot.lane.b32.xlu0 %v540, 127
    %v563 = vpop.permute.xlu0 %562
    %v566 = vadd.f32 %v556, %v561
    %v567 = vadd.f32 %v557, %v563
    %vm568 = vcmask 121856
    %569 = vst.msk [vmem:[%s2] sm:$0xff] %vm568, %v566
    %570 = vst.msk [vmem:[%s2 + $0x8] sm:$0xff] %vm568, %v567
    // Predicated region
    $region14: #{l1_tvloss_charbonnier.1} parent=1 // pred_check
      _
    $region15: #{l1_tvloss_charbonnier.1} parent=1 // pred_check_branch
      %572 = sbr.rel (0) target = $region17
    $region16: #{l1_tvloss_charbonnier.1} parent=1 // pred_region
      _
    $region17: #{l1_tvloss_charbonnier.1} parent=1 // pred_fallthru
      _
    // Predicated region
    $region18: #{l1_tvloss_charbonnier.1} parent=1 // pred_check
      _
    $region19: #{l1_tvloss_charbonnier.1} parent=1 // pred_check_branch
      %574 = sbr.rel (0) target = $region21
    $region20: #{l1_tvloss_charbonnier.1} parent=1 // pred_region
      _
    $region21: #{l1_tvloss_charbonnier.1} parent=1 // pred_fallthru
      _
    // Predicated region
    $region22: #{l1_tvloss_charbonnier.1} parent=1 // pred_check
      _
    $region23: #{l1_tvloss_charbonnier.1} parent=1 // pred_check_branch
      %576 = sbr.rel (0) target = $region25
    $region24: #{l1_tvloss_charbonnier.1} parent=1 // pred_region
      _
    $region25: #{l1_tvloss_charbonnier.1} parent=1 // pred_fallthru
      _
    // Predicated region
    $region26: #{l1_tvloss_charbonnier.1} parent=1 // pred_check
      _
    $region27: #{l1_tvloss_charbonnier.1} parent=1 // pred_check_branch
      %578 = sbr.rel (0) target = $region29
    $region28: #{l1_tvloss_charbonnier.1} parent=1 // pred_region
      _
    $region29: #{l1_tvloss_charbonnier.1} parent=1 // pred_fallthru
      _
    %579 = vsyncpa [#allocation3], 1

</llo_original>
